<compile_context>
chip_gen: v5e
topology: v5e:2x2
jax: 0.10.0
libtpu: 0.0.40
codegen_flags: <defaults>
</compile_context>

<pallas_src>
import functools

import jax
import jax.numpy as jnp
from jax.experimental import pallas as pl
from jax.experimental.pallas import tpu as pltpu


def _channel_attention_kernel(x_ref, w1_ref, b1_ref, w2_ref, b2_ref, out_ref,
                              sum_acc, max_acc, sume_acc, sumex_acc, *, inv_hw):
    t = pl.program_id(1)

    # --- init running stats at the first spatial tile of each image ---
    @pl.when(t == 0)
    def _():
        sum_acc[...] = jnp.zeros_like(sum_acc)
        max_acc[...] = jnp.full_like(max_acc, -jnp.inf)
        sume_acc[...] = jnp.zeros_like(sume_acc)
        sumex_acc[...] = jnp.zeros_like(sumex_acc)

    # --- one fused pass over this (C, THW) tile: sum / max / softpool stats ---
    xt = x_ref[0].astype(jnp.float32)                         # (C, THW), f32 compute

    tile_max = jnp.max(xt, axis=1, keepdims=True)             # (C, 1)
    m_old = max_acc[...]
    m_new = jnp.maximum(m_old, tile_max)
    rescale = jnp.exp(m_old - m_new)                          # 0.0 on first tile (exp(-inf))

    e = jnp.exp(xt - m_new)                                   # numerically-stable softpool
    sum_acc[...] = sum_acc[...] + jnp.sum(xt, axis=1, keepdims=True)
    sume_acc[...] = rescale * sume_acc[...] + jnp.sum(e, axis=1, keepdims=True)
    sumex_acc[...] = rescale * sumex_acc[...] + jnp.sum(e * xt, axis=1, keepdims=True)
    max_acc[...] = m_new

    # --- finalize: batched shared-MLP + incr Linear + sigmoid, once per image ---
    @pl.when(t == pl.num_programs(1) - 1)
    def _():
        avg_pool = sum_acc[...] * inv_hw                      # (C, 1)  == global avg pool
        max_pool = max_acc[...]                               # (C, 1)  reuse running max
        soft_pool = sumex_acc[...] / sume_acc[...]            # (C, 1)  SoftPool2d

        # Pack [avg | max | soft] as lanes of a single (C, 3) RHS -> ONE MXU matmul.
        c = avg_pool.shape[0]
        lane = jax.lax.broadcasted_iota(jnp.int32, (c, 3), 1)
        pools = jnp.where(lane == 0, avg_pool,
                          jnp.where(lane == 1, max_pool, soft_pool))          # (C, 3)

        h = jnp.dot(w1_ref[...], pools, preferred_element_type=jnp.float32)
        h = jnp.maximum(h + b1_ref[...], 0.0)                                  # (hidden, 3)

        # Unpack the three columns (mask + lane-reduce: robust, single-vreg cost).
        hl = jax.lax.broadcasted_iota(jnp.int32, h.shape, 1)
        h_avg = jnp.sum(jnp.where(hl == 0, h, 0.0), axis=1, keepdims=True)
        h_max = jnp.sum(jnp.where(hl == 1, h, 0.0), axis=1, keepdims=True)
        h_soft = jnp.sum(jnp.where(hl == 2, h, 0.0), axis=1, keepdims=True)
        weight_pool = h_soft * (h_avg + h_max)                                 # (hidden, 1)

        logits = jnp.dot(w2_ref[...], weight_pool,
                         preferred_element_type=jnp.float32) + b2_ref[...]     # (C, 1)
        out_ref[0] = jax.nn.sigmoid(logits)


def _pick_hw_tile(hw, c, itemsize, budget_bytes=2 * 1024 * 1024):
    """Largest multiple-of-128 divisor of hw whose (c, tile) block fits the per-buffer budget."""
    if hw % 128 != 0:
        return hw                                  # full block (== array dim) is still legal
    max_lanes = max(128, (budget_bytes // max(c * itemsize, 1)) // 128 * 128)
    tile = 128
    cand = 128
    while cand <= min(hw, max_lanes):
        if hw % cand == 0:
            tile = cand
        cand += 128
    return tile


def channel_attention(x_nchw, w1, b1, w2, b2, *, hw_tile=None):
    """x_nchw: (N, C, H, W). w1: (C//r, C), b1: (C//r,), w2: (C, C//r), b2: (C,)
    (same layout as the nn.Linear weights). Returns the (N, C, H, W) attention map."""
    N, C, H, W = x_nchw.shape
    HW = H * W
    hidden = w1.shape[0]

    x_flat = x_nchw.reshape(N, C, HW)              # keep native dtype (bf16 halves HBM read)
    if hw_tile is None:
        hw_tile = _pick_hw_tile(HW, C, x_flat.dtype.itemsize)
    assert HW % hw_tile == 0, (HW, hw_tile)
    n_tiles = HW // hw_tile

    kernel = functools.partial(_channel_attention_kernel, inv_hw=1.0 / HW)

    att = pl.pallas_call(
        kernel,
        out_shape=jax.ShapeDtypeStruct((N, C, 1), jnp.float32),
        grid_spec=pltpu.PrefetchScalarGridSpec(
            num_scalar_prefetch=0,
            grid=(N, n_tiles),
            in_specs=[
                pl.BlockSpec((1, C, hw_tile), lambda n, t: (n, 0, t)),   # x spatial tile
                pl.BlockSpec((hidden, C), lambda n, t: (0, 0)),          # mlp weight (out, in)
                pl.BlockSpec((hidden, 1), lambda n, t: (0, 0)),          # mlp bias (column)
                pl.BlockSpec((C, hidden), lambda n, t: (0, 0)),          # incr weight (out, in)
                pl.BlockSpec((C, 1), lambda n, t: (0, 0)),               # incr bias (column)
            ],
            out_specs=pl.BlockSpec((1, C, 1), lambda n, t: (n, 0, 0)),   # per-channel att only
            scratch_shapes=[pltpu.VMEM((C, 1), jnp.float32)] * 4,
        ),
        compiler_params=pltpu.CompilerParams(
            dimension_semantics=("parallel", "arbitrary"),
            vmem_limit_bytes=32 * 1024 * 1024,
        ),
    )(x_flat,
      w1.astype(jnp.float32),
      b1.reshape(hidden, 1).astype(jnp.float32),
      w2.astype(jnp.float32),
      b2.reshape(C, 1).astype(jnp.float32))

    # expand_as(x) outside the kernel: XLA fuses this broadcast into the consumer.
    att = att.reshape(N, C, 1, 1).astype(x_nchw.dtype)
    return jnp.broadcast_to(att, (N, C, H, W))


def channel_attention_ref(x, w1, b1, w2, b2):
    """Pure-JAX reference mirroring the PyTorch forward (for validation)."""
    N, C, H, W = x.shape
    xf = x.reshape(N, C, H * W).astype(jnp.float32)
    avg = xf.mean(-1)                                    # (N, C)
    mx = xf.max(-1)                                      # (N, C)
    e = jnp.exp(xf - mx[:, :, None])                     # stable; same ratio as plain exp
    soft = (e * xf).sum(-1) / e.sum(-1)                  # (N, C)
    mlp = lambda v: jnp.maximum(v @ w1.T + b1, 0.0)      # (N, hidden)
    weight_pool = mlp(soft) * (mlp(avg) + mlp(mx))
    att = jax.nn.sigmoid(weight_pool @ w2.T + b2)        # (N, C)
    return jnp.broadcast_to(att[:, :, None, None], x.shape).astype(x.dtype)


if __name__ == "__main__":
    key = jax.random.PRNGKey(0)
    N, C, H, W = 2, 8, 16, 16
    reduction_ratio = 2
    hidden = C // reduction_ratio

    kx, k1, kb1, k2, kb2 = jax.random.split(key, 5)
    x = jax.random.normal(kx, (N, C, H, W), jnp.float32)
    # Deterministic synthetic params, nn.Linear layout (weight=(out,in), bias=(out,))
    w1 = jax.random.normal(k1, (hidden, C), jnp.float32) * 0.3
    b1 = jax.random.normal(kb1, (hidden,), jnp.float32) * 0.1
    w2 = jax.random.normal(k2, (C, hidden), jnp.float32) * 0.3
    b2 = jax.random.normal(kb2, (C,), jnp.float32) * 0.1

    ref = channel_attention_ref(x, w1, b1, w2, b2)

    # Multi-tile path: HW=256 split into 2 lane-dense tiles exercises the online accumulation.
    out_tiled = jax.block_until_ready(channel_attention(x, w1, b1, w2, b2, hw_tile=128))
    assert out_tiled.shape == (N, C, H, W), out_tiled.shape
    assert jnp.allclose(out_tiled, ref, atol=1e-5, rtol=1e-5), float(jnp.abs(out_tiled - ref).max())

    # Default (auto tile-size) path.
    out = jax.block_until_ready(channel_attention(x, w1, b1, w2, b2))
    assert jnp.allclose(out, ref, atol=1e-5, rtol=1e-5), float(jnp.abs(out - ref).max())

    print("KERNEL_OK")
</pallas_src>

<mosaic_0001>
module attributes {stable_mosaic.version = 11 : i64} {
  func.func @_channel_attention_kernel(%arg0: i32, %arg1: i32, %arg2: memref<1x8x128xf32, #tpu.memory_space<vmem>>, %arg3: memref<4x8xf32, #tpu.memory_space<vmem>>, %arg4: memref<4x1xf32, #tpu.memory_space<vmem>>, %arg5: memref<8x4xf32, #tpu.memory_space<vmem>>, %arg6: memref<8x1xf32, #tpu.memory_space<vmem>>, %arg7: memref<1x8x1xf32, #tpu.memory_space<vmem>>, %arg8: memref<8x1xf32, #tpu.memory_space<vmem>>, %arg9: memref<8x1xf32, #tpu.memory_space<vmem>>, %arg10: memref<8x1xf32, #tpu.memory_space<vmem>>, %arg11: memref<8x1xf32, #tpu.memory_space<vmem>>) attributes {dimension_semantics = [#tpu.dimension_semantics<parallel>, #tpu.dimension_semantics<arbitrary>], iteration_bounds = array<i64: 2, 2>, scalar_prefetch = 0 : i64, scratch_operands = 4 : i64, tpu.core_type = #tpu.core_type<tc>, window_params = [{transform_indices = @transform_0, window_bounds = array<i64: 1, 8, 128>}, {pipeline_mode = #tpu.pipeline_mode<synchronous>, transform_indices = @transform_1, window_bounds = array<i64: 4, 8>}, {pipeline_mode = #tpu.pipeline_mode<synchronous>, transform_indices = @transform_2, window_bounds = array<i64: 4, 1>}, {pipeline_mode = #tpu.pipeline_mode<synchronous>, transform_indices = @transform_3, window_bounds = array<i64: 8, 4>}, {pipeline_mode = #tpu.pipeline_mode<synchronous>, transform_indices = @transform_4, window_bounds = array<i64: 8, 1>}, {transform_indices = @transform_5, window_bounds = array<i64: 1, 8, 1>}]} {
    %c0_i32 = arith.constant 0 : i32
    %0 = arith.cmpi eq, %arg1, %c0_i32 : i32
    %1 = arith.extui %0 : i1 to i32
    %c0_i32_0 = arith.constant 0 : i32
    %2 = arith.cmpi ne, %1, %c0_i32_0 : i32
    scf.if %2 {
      %cst_23 = arith.constant 0.000000e+00 : f32
      %36 = vector.broadcast %cst_23 : f32 to vector<8x1xf32>
      %c0_24 = arith.constant 0 : index
      %c0_25 = arith.constant 0 : index
      %37 = vector.load %arg8[%c0_24, %c0_25] : memref<8x1xf32, #tpu.memory_space<vmem>>, vector<8x1xf32>
      tpu.vector_store %arg8[%c0_24, %c0_25], %36 {strides = array<i32>} : memref<8x1xf32, #tpu.memory_space<vmem>>, vector<8x1xf32>,
      %cst_26 = arith.constant 0xFF800000 : f32
      %38 = vector.broadcast %cst_26 : f32 to vector<8x1xf32>
      %c0_27 = arith.constant 0 : index
      %c0_28 = arith.constant 0 : index
      %39 = vector.load %arg9[%c0_27, %c0_28] : memref<8x1xf32, #tpu.memory_space<vmem>>, vector<8x1xf32>
      tpu.vector_store %arg9[%c0_27, %c0_28], %38 {strides = array<i32>} : memref<8x1xf32, #tpu.memory_space<vmem>>, vector<8x1xf32>,
      %cst_29 = arith.constant 0.000000e+00 : f32
      %40 = vector.broadcast %cst_29 : f32 to vector<8x1xf32>
      %c0_30 = arith.constant 0 : index
      %c0_31 = arith.constant 0 : index
      %41 = vector.load %arg10[%c0_30, %c0_31] : memref<8x1xf32, #tpu.memory_space<vmem>>, vector<8x1xf32>
      tpu.vector_store %arg10[%c0_30, %c0_31], %40 {strides = array<i32>} : memref<8x1xf32, #tpu.memory_space<vmem>>, vector<8x1xf32>,
      %cst_32 = arith.constant 0.000000e+00 : f32
      %42 = vector.broadcast %cst_32 : f32 to vector<8x1xf32>
      %c0_33 = arith.constant 0 : index
      %c0_34 = arith.constant 0 : index
      %43 = vector.load %arg11[%c0_33, %c0_34] : memref<8x1xf32, #tpu.memory_space<vmem>>, vector<8x1xf32>
      tpu.vector_store %arg11[%c0_33, %c0_34], %42 {strides = array<i32>} : memref<8x1xf32, #tpu.memory_space<vmem>>, vector<8x1xf32>,
    } else {
    }
    %c0 = arith.constant 0 : index
    %c0_1 = arith.constant 0 : index
    %c0_2 = arith.constant 0 : index
    %3 = vector.load %arg2[%c0, %c0_1, %c0_2] : memref<1x8x128xf32, #tpu.memory_space<vmem>>, vector<1x8x128xf32>
    %4 = vector.shape_cast %3 : vector<1x8x128xf32> to vector<8x128xf32>
    %cst = arith.constant dense<0xFF800000> : vector<8xf32>
    %5 = vector.multi_reduction <maximumf>, %4, %cst [1] : vector<8x128xf32> to vector<8xf32>
    %6 = vector.shape_cast %5 : vector<8xf32> to vector<8x1xf32>
    %c0_3 = arith.constant 0 : index
    %c0_4 = arith.constant 0 : index
    %7 = vector.load %arg9[%c0_3, %c0_4] : memref<8x1xf32, #tpu.memory_space<vmem>>, vector<8x1xf32>
    %8 = arith.maximumf %7, %6 : vector<8x1xf32>
    %9 = arith.subf %7, %8 : vector<8x1xf32>
    %10 = math.exp %9 : vector<8x1xf32>
    %11 = vector.broadcast %8 : vector<8x1xf32> to vector<8x128xf32>
    %12 = arith.subf %4, %11 : vector<8x128xf32>
    %13 = math.exp %12 : vector<8x128xf32>
    %c0_5 = arith.constant 0 : index
    %c0_6 = arith.constant 0 : index
    %14 = vector.load %arg8[%c0_5, %c0_6] : memref<8x1xf32, #tpu.memory_space<vmem>>, vector<8x1xf32>
    %cst_7 = arith.constant dense<0.000000e+00> : vector<8xf32>
    %15 = vector.multi_reduction <add>, %4, %cst_7 [1] : vector<8x128xf32> to vector<8xf32>
    %16 = vector.shape_cast %15 : vector<8xf32> to vector<8x1xf32>
    %17 = arith.addf %14, %16 : vector<8x1xf32>
    %c0_8 = arith.constant 0 : index
    %c0_9 = arith.constant 0 : index
    %18 = vector.load %arg8[%c0_8, %c0_9] : memref<8x1xf32, #tpu.memory_space<vmem>>, vector<8x1xf32>
    tpu.vector_store %arg8[%c0_8, %c0_9], %17 {strides = array<i32>} : memref<8x1xf32, #tpu.memory_space<vmem>>, vector<8x1xf32>,
    %c0_10 = arith.constant 0 : index
    %c0_11 = arith.constant 0 : index
    %19 = vector.load %arg10[%c0_10, %c0_11] : memref<8x1xf32, #tpu.memory_space<vmem>>, vector<8x1xf32>
    %20 = arith.mulf %10, %19 : vector<8x1xf32>
    %cst_12 = arith.constant dense<0.000000e+00> : vector<8xf32>
    %21 = vector.multi_reduction <add>, %13, %cst_12 [1] : vector<8x128xf32> to vector<8xf32>
    %22 = vector.shape_cast %21 : vector<8xf32> to vector<8x1xf32>
    %23 = arith.addf %20, %22 : vector<8x1xf32>
    %c0_13 = arith.constant 0 : index
    %c0_14 = arith.constant 0 : index
    %24 = vector.load %arg10[%c0_13, %c0_14] : memref<8x1xf32, #tpu.memory_space<vmem>>, vector<8x1xf32>
    tpu.vector_store %arg10[%c0_13, %c0_14], %23 {strides = array<i32>} : memref<8x1xf32, #tpu.memory_space<vmem>>, vector<8x1xf32>,
    %c0_15 = arith.constant 0 : index
    %c0_16 = arith.constant 0 : index
    %25 = vector.load %arg11[%c0_15, %c0_16] : memref<8x1xf32, #tpu.memory_space<vmem>>, vector<8x1xf32>
    %26 = arith.mulf %10, %25 : vector<8x1xf32>
    %27 = arith.mulf %13, %4 : vector<8x128xf32>
    %cst_17 = arith.constant dense<0.000000e+00> : vector<8xf32>
    %28 = vector.multi_reduction <add>, %27, %cst_17 [1] : vector<8x128xf32> to vector<8xf32>
    %29 = vector.shape_cast %28 : vector<8xf32> to vector<8x1xf32>
    %30 = arith.addf %26, %29 : vector<8x1xf32>
    %c0_18 = arith.constant 0 : index
    %c0_19 = arith.constant 0 : index
    %31 = vector.load %arg11[%c0_18, %c0_19] : memref<8x1xf32, #tpu.memory_space<vmem>>, vector<8x1xf32>
    tpu.vector_store %arg11[%c0_18, %c0_19], %30 {strides = array<i32>} : memref<8x1xf32, #tpu.memory_space<vmem>>, vector<8x1xf32>,
    %c0_20 = arith.constant 0 : index
    %c0_21 = arith.constant 0 : index
    %32 = vector.load %arg9[%c0_20, %c0_21] : memref<8x1xf32, #tpu.memory_space<vmem>>, vector<8x1xf32>
    tpu.vector_store %arg9[%c0_20, %c0_21], %8 {strides = array<i32>} : memref<8x1xf32, #tpu.memory_space<vmem>>, vector<8x1xf32>,
    %c1_i32 = arith.constant 1 : i32
    %33 = arith.cmpi eq, %arg1, %c1_i32 : i32
    %34 = arith.extui %33 : i1 to i32
    %c0_i32_22 = arith.constant 0 : i32
    %35 = arith.cmpi ne, %34, %c0_i32_22 : i32
    scf.if %35 {
      %c0_23 = arith.constant 0 : index
      %c0_24 = arith.constant 0 : index
      %36 = vector.load %arg8[%c0_23, %c0_24] : memref<8x1xf32, #tpu.memory_space<vmem>>, vector<8x1xf32>
      %cst_25 = arith.constant 3.906250e-03 : f32
      %37 = vector.broadcast %cst_25 : f32 to vector<8x1xf32>
      %38 = arith.mulf %36, %37 : vector<8x1xf32>
      %c0_26 = arith.constant 0 : index
      %c0_27 = arith.constant 0 : index
      %39 = vector.load %arg9[%c0_26, %c0_27] : memref<8x1xf32, #tpu.memory_space<vmem>>, vector<8x1xf32>
      %c0_28 = arith.constant 0 : index
      %c0_29 = arith.constant 0 : index
      %40 = vector.load %arg11[%c0_28, %c0_29] : memref<8x1xf32, #tpu.memory_space<vmem>>, vector<8x1xf32>
      %c0_30 = arith.constant 0 : index
      %c0_31 = arith.constant 0 : index
      %41 = vector.load %arg10[%c0_30, %c0_31] : memref<8x1xf32, #tpu.memory_space<vmem>>, vector<8x1xf32>
      %42 = arith.divf %40, %41 : vector<8x1xf32>
      %43 = tpu.iota {dimensions = array<i32: 1>} : vector<8x3xi32>
      %c0_i32_32 = arith.constant 0 : i32
      %44 = vector.broadcast %c0_i32_32 : i32 to vector<8x3xi32>
      %45 = arith.cmpi eq, %43, %44 : vector<8x3xi32>
      %c1_i32_33 = arith.constant 1 : i32
      %46 = vector.broadcast %c1_i32_33 : i32 to vector<8x3xi32>
      %47 = arith.cmpi eq, %43, %46 : vector<8x3xi32>
      %48 = vector.shape_cast %39 : vector<8x1xf32> to vector<8x1xf32>
      %49 = vector.broadcast %48 : vector<8x1xf32> to vector<8x3xf32>
      %50 = vector.shape_cast %42 : vector<8x1xf32> to vector<8x1xf32>
      %51 = vector.broadcast %50 : vector<8x1xf32> to vector<8x3xf32>
      %52 = arith.select %47, %49, %51 : vector<8x3xi1>, vector<8x3xf32>
      %53 = vector.shape_cast %38 : vector<8x1xf32> to vector<8x1xf32>
      %54 = vector.broadcast %53 : vector<8x1xf32> to vector<8x3xf32>
      %55 = arith.select %45, %54, %52 : vector<8x3xi1>, vector<8x3xf32>
      %c0_34 = arith.constant 0 : index
      %c0_35 = arith.constant 0 : index
      %56 = vector.load %arg3[%c0_34, %c0_35] : memref<4x8xf32, #tpu.memory_space<vmem>>, vector<4x8xf32>
      %cst_36 = arith.constant dense<0.000000e+00> : vector<4x3xf32>
      %57 = tpu.matmul %56, %55, %cst_36 {dimension_numbers = #tpu.dot_dimension_numbers<[1], [0], [0], [1], [0, 0, 1, 1], [], []>} : vector<4x8xf32>, vector<8x3xf32>, vector<4x3xf32> -> vector<4x3xf32>
      %c0_37 = arith.constant 0 : index
      %c0_38 = arith.constant 0 : index
      %58 = vector.load %arg4[%c0_37, %c0_38] : memref<4x1xf32, #tpu.memory_space<vmem>>, vector<4x1xf32>
      %59 = vector.broadcast %58 : vector<4x1xf32> to vector<4x3xf32>
      %60 = arith.addf %57, %59 : vector<4x3xf32>
      %cst_39 = arith.constant 0.000000e+00 : f32
      %61 = vector.broadcast %cst_39 : f32 to vector<4x3xf32>
      %62 = arith.maximumf %60, %61 : vector<4x3xf32>
      %63 = tpu.iota {dimensions = array<i32: 1>} : vector<4x3xi32>
      %c0_i32_40 = arith.constant 0 : i32
      %64 = vector.broadcast %c0_i32_40 : i32 to vector<4x3xi32>
      %65 = arith.cmpi eq, %63, %64 : vector<4x3xi32>
      %cst_41 = arith.constant 0.000000e+00 : f32
      %66 = vector.broadcast %cst_41 : f32 to vector<4x3xf32>
      %67 = arith.select %65, %62, %66 : vector<4x3xi1>, vector<4x3xf32>
      %cst_42 = arith.constant dense<0.000000e+00> : vector<4xf32>
      %68 = vector.multi_reduction <add>, %67, %cst_42 [1] : vector<4x3xf32> to vector<4xf32>
      %69 = vector.shape_cast %68 : vector<4xf32> to vector<4x1xf32>
      %c1_i32_43 = arith.constant 1 : i32
      %70 = vector.broadcast %c1_i32_43 : i32 to vector<4x3xi32>
      %71 = arith.cmpi eq, %63, %70 : vector<4x3xi32>
      %cst_44 = arith.constant 0.000000e+00 : f32
      %72 = vector.broadcast %cst_44 : f32 to vector<4x3xf32>
      %73 = arith.select %71, %62, %72 : vector<4x3xi1>, vector<4x3xf32>
      %cst_45 = arith.constant dense<0.000000e+00> : vector<4xf32>
      %74 = vector.multi_reduction <add>, %73, %cst_45 [1] : vector<4x3xf32> to vector<4xf32>
      %75 = vector.shape_cast %74 : vector<4xf32> to vector<4x1xf32>
      %c2_i32 = arith.constant 2 : i32
      %76 = vector.broadcast %c2_i32 : i32 to vector<4x3xi32>
      %77 = arith.cmpi eq, %63, %76 : vector<4x3xi32>
      %cst_46 = arith.constant 0.000000e+00 : f32
      %78 = vector.broadcast %cst_46 : f32 to vector<4x3xf32>
      %79 = arith.select %77, %62, %78 : vector<4x3xi1>, vector<4x3xf32>
      %cst_47 = arith.constant dense<0.000000e+00> : vector<4xf32>
      %80 = vector.multi_reduction <add>, %79, %cst_47 [1] : vector<4x3xf32> to vector<4xf32>
      %81 = vector.shape_cast %80 : vector<4xf32> to vector<4x1xf32>
      %82 = arith.addf %69, %75 : vector<4x1xf32>
      %83 = arith.mulf %81, %82 : vector<4x1xf32>
      %c0_48 = arith.constant 0 : index
      %c0_49 = arith.constant 0 : index
      %84 = vector.load %arg5[%c0_48, %c0_49] : memref<8x4xf32, #tpu.memory_space<vmem>>, vector<8x4xf32>
      %cst_50 = arith.constant dense<0.000000e+00> : vector<8x1xf32>
      %85 = tpu.matmul %84, %83, %cst_50 {dimension_numbers = #tpu.dot_dimension_numbers<[1], [0], [0], [1], [0, 0, 1, 1], [], []>} : vector<8x4xf32>, vector<4x1xf32>, vector<8x1xf32> -> vector<8x1xf32>
      %c0_51 = arith.constant 0 : index
      %c0_52 = arith.constant 0 : index
      %86 = vector.load %arg6[%c0_51, %c0_52] : memref<8x1xf32, #tpu.memory_space<vmem>>, vector<8x1xf32>
      %87 = arith.addf %85, %86 : vector<8x1xf32>
      %88 = arith.negf %87 : vector<8x1xf32>
      %89 = math.exp %88 : vector<8x1xf32>
      %cst_53 = arith.constant 1.000000e+00 : f32
      %90 = vector.broadcast %cst_53 : f32 to vector<8x1xf32>
      %91 = arith.addf %90, %89 : vector<8x1xf32>
      %92 = arith.divf %90, %91 : vector<8x1xf32>
      %c0_54 = arith.constant 0 : index
      %c0_55 = arith.constant 0 : index
      %c0_56 = arith.constant 0 : index
      %93 = vector.load %arg7[%c0_54, %c0_55, %c0_56] : memref<1x8x1xf32, #tpu.memory_space<vmem>>, vector<1x8x1xf32>
      %94 = vector.shape_cast %93 : vector<1x8x1xf32> to vector<8x1xf32>
      %95 = vector.shape_cast %92 : vector<8x1xf32> to vector<1x8x1xf32>
      tpu.vector_store %arg7[%c0_54, %c0_55, %c0_56], %95 {strides = array<i32>} : memref<1x8x1xf32, #tpu.memory_space<vmem>>, vector<1x8x1xf32>,
    } else {
    }
    return
  }
  func.func @transform_0(%arg0: i32, %arg1: i32) -> (i32, i32, i32) {
    %c0_i32 = arith.constant 0 : i32
    %c0_i32_0 = arith.constant 0 : i32
    return %arg0, %c0_i32, %arg1 : i32, i32, i32
  }
  func.func @transform_1(%arg0: i32, %arg1: i32) -> (i32, i32) {
    %c0_i32 = arith.constant 0 : i32
    %c0_i32_0 = arith.constant 0 : i32
    %c0_i32_1 = arith.constant 0 : i32
    return %c0_i32, %c0_i32_0 : i32, i32
  }
  func.func @transform_2(%arg0: i32, %arg1: i32) -> (i32, i32) {
    %c0_i32 = arith.constant 0 : i32
    %c0_i32_0 = arith.constant 0 : i32
    %c0_i32_1 = arith.constant 0 : i32
    return %c0_i32, %c0_i32_0 : i32, i32
  }
  func.func @transform_3(%arg0: i32, %arg1: i32) -> (i32, i32) {
    %c0_i32 = arith.constant 0 : i32
    %c0_i32_0 = arith.constant 0 : i32
    %c0_i32_1 = arith.constant 0 : i32
    return %c0_i32, %c0_i32_0 : i32, i32
  }
  func.func @transform_4(%arg0: i32, %arg1: i32) -> (i32, i32) {
    %c0_i32 = arith.constant 0 : i32
    %c0_i32_0 = arith.constant 0 : i32
    %c0_i32_1 = arith.constant 0 : i32
    return %c0_i32, %c0_i32_0 : i32, i32
  }
  func.func @transform_5(%arg0: i32, %arg1: i32) -> (i32, i32, i32) {
    %c0_i32 = arith.constant 0 : i32
    %c0_i32_0 = arith.constant 0 : i32
    %c0_i32_1 = arith.constant 0 : i32
    return %arg0, %c0_i32, %c0_i32_0 : i32, i32, i32
  }
}

</mosaic_0001>

<llo_original>
// kernel: tpu_custom_call.1
$region0: #{tpu_custom_call.1}
  #allocation0 [shape = 'u32[]', space=smem, size = 0x4, offset = 0x4, fixed_abs, tag = 'smem constant byte address 0x4 - core index']
  #allocation1 [shape = 'u32[72,128]{1,0:T(1,128)}', space=vmem, size = 0x9000, scoped, tag = 'internal scratch']
  #allocation2 [shape = 'f32[8,1]{1,0:T(8,128)}', space=vmem, size = 0x1000, scoped, tag = 'scratch operand']
  #allocation3 [shape = 'f32[8,1]{1,0:T(8,128)}', space=vmem, size = 0x1000, scoped, tag = 'scratch operand']
  #allocation4 [shape = 'f32[8,1]{1,0:T(8,128)}', space=vmem, size = 0x1000, scoped, tag = 'scratch operand']
  #allocation5 [shape = 'f32[8,1]{1,0:T(8,128)}', space=vmem, size = 0x1000, scoped, tag = 'scratch operand']
  %s0 = inlined_call_operand.hbm [shape: f32[2,8,256], index: 0, kind: input, shape index: {}]
  %s1 = inlined_call_operand.vmem [shape: f32[4,8], index: 1, kind: input, shape index: {}]
  %s2 = inlined_call_operand.vmem [shape: f32[4,1], index: 2, kind: input, shape index: {}]
  %s3 = inlined_call_operand.vmem [shape: f32[8,4], index: 3, kind: input, shape index: {}]
  %s4 = inlined_call_operand.vmem [shape: f32[8,1], index: 4, kind: input, shape index: {}]
  %s5 = inlined_call_operand.vmem [shape: f32[2,8,1], index: 5, kind: output, shape index: {}]
  %s6 = sld [smem:[#allocation0]]
  $region65: #{tpu_custom_call.1} parent=0
    _
  %s8 = ssub.s32 1, %s6
  %s9 = scalar_select 0, %s8, %s6
  $region1: #{tpu_custom_call.1} parent=0
    #allocation6 [shape = 'u8[8192]{0}', space=vmem, size = 0x2000, scoped, tag = 'input window, operand 0']
    #allocation7 [shape = 's32[2]{0}', space=sflag, size = 0x8, scoped, tag = 'scoped memory for tpu_custom_call.1']
    %10 = vsyncpa [#allocation7], 0
    %s11 = scalar_lea.sflag [#allocation7], 1
    %12 = vsyncpa %s11, 0
    loop: start=0, step=1, limit=6
    $region2: #{tpu_custom_call.1} parent=1 // loop_pre_header
      _
    $region3: #{tpu_custom_call.1} parent=1 // loop_header
      %s14 = sphi 0, %s18
      %p15 = scmp.ge.s32.totalorder %s14, 6
      %s21 = sphi 0, %s33
      %s22 = sphi 0, %s29
      %s23 = sphi 0, %s21
      %s24 = sphi 0, %s22
      %s25 = sphi 0, %s23
      %s26 = sphi 0, %s24
      %s38 = sphi 0, %s40
      %s41 = sphi 0, %s38
      %s42 = sphi 0, %s41
      %s58 = sphi 0, %s42
      %s62 = sphi 0, %s62
      %s64 = sphi 0, %s62
      %s65 = sphi 0, %s64
      %s79 = sphi 0, %s65
      %s83 = sphi 0, %s83
      %s85 = sphi 0, %s83
      %s86 = sphi 0, %s85
      %s100 = sphi 0, %s86
      %s104 = sphi 0, %s104
      %s106 = sphi 0, %s104
      %s107 = sphi 0, %s106
      %s121 = sphi 0, %s107
      %s125 = sphi 0, %s125
      %s127 = sphi 0, %s125
      %s128 = sphi 0, %s127
      %s142 = sphi 0, %s128
      %s148 = sphi 0, %s150
      %s151 = sphi 0, %s148
      %s152 = sphi 0, %s151
      %s168 = sphi 0, %s152
    $region4: #{tpu_custom_call.1} parent=1 // loop_header_branch
      %17 = sbr.rel (%p15) target = $region8
    $region5: #{tpu_custom_call.1} parent=1 // loop_body
      %s19 = ssub.s32 %s14, 1
      %s20 = ssub.s32 %s14, 2
      %s27 = sadd.s32 1, %s22
      %p28 = scmp.ge.s32.totalorder %s27, 2
      %s29 = scalar_select %p28, 0, %s27
      %s30 = sadd.s32 1, %s21
      %s31 = scalar_select %p28, %s30, %s21
      %p32 = scmp.ge.s32.totalorder %s31, 2
      %s33 = scalar_select %p32, 0, %s31
      %s34 = ssub.s32 %s21, %s33
      %s35 = ssub.s32 %s22, %s29
      %s36 = sor.u32 %s34, %s35
      %p37 = scmp.eq.s32.totalorder %s36, 0
      %s39 = sadd.s32 %s38, 1
      %s40 = scalar_select %p37, %s38, %s39
      %p43 = pneg %p37
      %p44 = scmp.eq.s32.totalorder %s14, 3
      %p45 = por %p43, %p44
      %p46 = scmp.ne.s32.totalorder %s38, %s41
      %p47 = scmp.eq.s32.totalorder %s14, 0
      %p48 = por %p46, %p47
      %p49 = scmp.ne.s32.totalorder %s38, %s41
      %p50 = scmp.eq.s32.totalorder %s19, 3
      %p51 = por %p49, %p50
      %p52 = scmp.ne.s32.totalorder %s41, %s42
      %p53 = scmp.eq.s32.totalorder %s19, 0
      %p54 = por %p52, %p53
      %p55 = scmp.ne.s32.totalorder %s41, %s42
      %p56 = scmp.eq.s32.totalorder %s20, 3
      %p57 = por %p55, %p56
      %p59 = scmp.ne.s32.totalorder %s42, %s58
      %p60 = scmp.eq.s32.totalorder %s20, 0
      %p61 = por %p59, %p60
      %s63 = sadd.s32 %s62, 1
      %p66 = scmp.eq.s32.totalorder %s14, 3
      %p67 = scmp.ne.s32.totalorder %s62, %s64
      %p68 = scmp.eq.s32.totalorder %s14, 0
      %p69 = por %p67, %p68
      %p70 = scmp.ne.s32.totalorder %s62, %s64
      %p71 = scmp.eq.s32.totalorder %s19, 3
      %p72 = por %p70, %p71
      %p73 = scmp.ne.s32.totalorder %s64, %s65
      %p74 = scmp.eq.s32.totalorder %s19, 0
      %p75 = por %p73, %p74
      %p76 = scmp.ne.s32.totalorder %s64, %s65
      %p77 = scmp.eq.s32.totalorder %s20, 3
      %p78 = por %p76, %p77
      %p80 = scmp.ne.s32.totalorder %s65, %s79
      %p81 = scmp.eq.s32.totalorder %s20, 0
      %p82 = por %p80, %p81
      %s84 = sadd.s32 %s83, 1
      %p87 = scmp.eq.s32.totalorder %s14, 3
      %p88 = scmp.ne.s32.totalorder %s83, %s85
      %p89 = scmp.eq.s32.totalorder %s14, 0
      %p90 = por %p88, %p89
      %p91 = scmp.ne.s32.totalorder %s83, %s85
      %p92 = scmp.eq.s32.totalorder %s19, 3
      %p93 = por %p91, %p92
      %p94 = scmp.ne.s32.totalorder %s85, %s86
      %p95 = scmp.eq.s32.totalorder %s19, 0
      %p96 = por %p94, %p95
      %p97 = scmp.ne.s32.totalorder %s85, %s86
      %p98 = scmp.eq.s32.totalorder %s20, 3
      %p99 = por %p97, %p98
      %p101 = scmp.ne.s32.totalorder %s86, %s100
      %p102 = scmp.eq.s32.totalorder %s20, 0
      %p103 = por %p101, %p102
      %s105 = sadd.s32 %s104, 1
      %p108 = scmp.eq.s32.totalorder %s14, 3
      %p109 = scmp.ne.s32.totalorder %s104, %s106
      %p110 = scmp.eq.s32.totalorder %s14, 0
      %p111 = por %p109, %p110
      %p112 = scmp.ne.s32.totalorder %s104, %s106
      %p113 = scmp.eq.s32.totalorder %s19, 3
      %p114 = por %p112, %p113
      %p115 = scmp.ne.s32.totalorder %s106, %s107
      %p116 = scmp.eq.s32.totalorder %s19, 0
      %p117 = por %p115, %p116
      %p118 = scmp.ne.s32.totalorder %s106, %s107
      %p119 = scmp.eq.s32.totalorder %s20, 3
      %p120 = por %p118, %p119
      %p122 = scmp.ne.s32.totalorder %s107, %s121
      %p123 = scmp.eq.s32.totalorder %s20, 0
      %p124 = por %p122, %p123
      %s126 = sadd.s32 %s125, 1
      %p129 = scmp.eq.s32.totalorder %s14, 3
      %p130 = scmp.ne.s32.totalorder %s125, %s127
      %p131 = scmp.eq.s32.totalorder %s14, 0
      %p132 = por %p130, %p131
      %p133 = scmp.ne.s32.totalorder %s125, %s127
      %p134 = scmp.eq.s32.totalorder %s19, 3
      %p135 = por %p133, %p134
      %p136 = scmp.ne.s32.totalorder %s127, %s128
      %p137 = scmp.eq.s32.totalorder %s19, 0
      %p138 = por %p136, %p137
      %p139 = scmp.ne.s32.totalorder %s127, %s128
      %p140 = scmp.eq.s32.totalorder %s20, 3
      %p141 = por %p139, %p140
      %p143 = scmp.ne.s32.totalorder %s128, %s142
      %p144 = scmp.eq.s32.totalorder %s20, 0
      %p145 = por %p143, %p144
      %s146 = ssub.s32 %s21, %s33
      %p147 = scmp.eq.s32.totalorder %s146, 0
      %s149 = sadd.s32 %s148, 1
      %s150 = scalar_select %p147, %s148, %s149
      %p153 = pneg %p147
      %p154 = scmp.eq.s32.totalorder %s14, 3
      %p155 = por %p153, %p154
      %p156 = scmp.ne.s32.totalorder %s148, %s151
      %p157 = scmp.eq.s32.totalorder %s14, 0
      %p158 = por %p156, %p157
      %p159 = scmp.ne.s32.totalorder %s148, %s151
      %p160 = scmp.eq.s32.totalorder %s19, 3
      %p161 = por %p159, %p160
      %p162 = scmp.ne.s32.totalorder %s151, %s152
      %p163 = scmp.eq.s32.totalorder %s19, 0
      %p164 = por %p162, %p163
      %p165 = scmp.ne.s32.totalorder %s151, %s152
      %p166 = scmp.eq.s32.totalorder %s20, 3
      %p167 = por %p165, %p166
      %p169 = scmp.ne.s32.totalorder %s152, %s168
      %p170 = scmp.eq.s32.totalorder %s20, 0
      %p171 = por %p169, %p170
      %p172 = scmp.le.s32.totalorder 1, %s14
      %p173 = scmp.lt.s32.totalorder %s14, 5
      %p174 = pnand %p172, %p173
      %p175 = pneg %p174
      // Predicated region
      $region9: #{tpu_custom_call.1} parent=5 // pred_check
        _
      $region10: #{tpu_custom_call.1} parent=5 // pred_check_branch
        %177 = sbr.rel (%p174) target = $region12
      $region11: #{tpu_custom_call.1} parent=5 // pred_region
        %s178 = ssub.s32 %s14, 1
        // Predicated region
        $region13: #{tpu_custom_call.1} parent=11 // pred_check
          %p179 = pneg %p75
        $region14: #{tpu_custom_call.1} parent=11 // pred_check_branch
          %181 = sbr.rel (%p179) target = $region16
        $region15: #{tpu_custom_call.1} parent=11 // pred_region
          _
        $region16: #{tpu_custom_call.1} parent=11 // pred_fallthru
          _
        // Predicated region
        $region17: #{tpu_custom_call.1} parent=11 // pred_check
          %p182 = pneg %p96
        $region18: #{tpu_custom_call.1} parent=11 // pred_check_branch
          %184 = sbr.rel (%p182) target = $region20
        $region19: #{tpu_custom_call.1} parent=11 // pred_region
          _
        $region20: #{tpu_custom_call.1} parent=11 // pred_fallthru
          _
        // Predicated region
        $region21: #{tpu_custom_call.1} parent=11 // pred_check
          %p185 = pneg %p117
        $region22: #{tpu_custom_call.1} parent=11 // pred_check_branch
          %187 = sbr.rel (%p185) target = $region24
        $region23: #{tpu_custom_call.1} parent=11 // pred_region
          _
        $region24: #{tpu_custom_call.1} parent=11 // pred_fallthru
          _
        // Predicated region
        $region25: #{tpu_custom_call.1} parent=11 // pred_check
          %p188 = pneg %p138
        $region26: #{tpu_custom_call.1} parent=11 // pred_check_branch
          %190 = sbr.rel (%p188) target = $region28
        $region27: #{tpu_custom_call.1} parent=11 // pred_region
          _
        $region28: #{tpu_custom_call.1} parent=11 // pred_fallthru
          _
      $region12: #{tpu_custom_call.1} parent=5 // pred_fallthru
        _
      %p191 = scmp.lt.s32.totalorder %s14, 4
      // Predicated region
      $region29: #{tpu_custom_call.1} parent=5 // pred_check
        %p192 = pneg %p191
      $region30: #{tpu_custom_call.1} parent=5 // pred_check_branch
        %194 = sbr.rel (%p192) target = $region32
      $region31: #{tpu_custom_call.1} parent=5 // pred_region
        // Predicated region
        $region33: #{tpu_custom_call.1} parent=31 // pred_check
          %p195 = pneg %p48
        $region34: #{tpu_custom_call.1} parent=31 // pred_check_branch
          %197 = sbr.rel (%p195) target = $region36
        $region35: #{tpu_custom_call.1} parent=31 // pred_region
          %s198 = sand.u32 %s38, 1
          %s199 = scalar_lea.sflag [#allocation7], %s198
          %s200 = sand.u32 %s38, 1
          %s201 = smul.addr %s200, 8
          %s202 = scalar_lea.vmem [#allocation6], %s201
          %204 = vsyncadd %s199, 0
          %s205 = smul.addr %s21, 2
          %s206 = sadd.s32 %s22, %s205
          %s207 = smul.addr %s206, 8
          %s208 = scalar_lea.hbm %s0, %s207
          %s210 = sshll.u32 %s208, 4
          %s211 = int_to_ptr.hbm [resolvable:$true] %s210
          %s212 = sshll.u32 %s202, 4
          %s213 = int_to_ptr.vmem [resolvable:$true] %s212
          %215 = dma.hbm_to_vmem [thread:$0]  %s211, 128, %s213, %s199
        $region36: #{tpu_custom_call.1} parent=31 // pred_fallthru
          _
      $region32: #{tpu_custom_call.1} parent=5 // pred_fallthru
        _
      %p216 = scmp.le.s32.totalorder 1, %s14
      %p217 = scmp.lt.s32.totalorder %s14, 5
      %p218 = pnand %p216, %p217
      %p219 = pneg %p218
      // Predicated region
      $region37: #{tpu_custom_call.1} parent=5 // pred_check
        _
      $region38: #{tpu_custom_call.1} parent=5 // pred_check_branch
        %221 = sbr.rel (%p218) target = $region40
      $region39: #{tpu_custom_call.1} parent=5 // pred_region
        %s222 = ssub.s32 %s14, 1
        %s223 = sand.u32 %s41, 1
        %s224 = scalar_lea.sflag [#allocation7], %s223
        %s225 = sand.u32 %s41, 1
        %s226 = smul.addr %s225, 8
        %s227 = scalar_lea.vmem [#allocation6], %s226
        // Predicated region
        $region41: #{tpu_custom_call.1} parent=39 // pred_check
          %p228 = pneg %p54
        $region42: #{tpu_custom_call.1} parent=39 // pred_check_branch
          %230 = sbr.rel (%p228) target = $region44
        $region43: #{tpu_custom_call.1} parent=39 // pred_region
          %232 = dma.done %s224, 128
        $region44: #{tpu_custom_call.1} parent=39 // pred_fallthru
          _
        %s233 = sand.u32 %s41, 1
        %s234 = scalar_lea.sflag [#allocation7], %s233
        %s235 = sand.u32 %s41, 1
        %s236 = smul.addr %s235, 8
        %s237 = scalar_lea.vmem [#allocation6], %s236
        %p238 = pneg %p54
        %p239 = pneg %p51
        %p240 = pneg %p75
        %p241 = pneg %p72
        %p242 = pneg %p96
        %p243 = pneg %p93
        %p244 = pneg %p117
        %p245 = pneg %p114
        %p246 = pneg %p138
        %p247 = pneg %p135
        %p248 = pneg %p164
        %p249 = pneg %p161
        %p250 = scmp.lt.s32.totalorder %s23, 1
        %s251 = scalar_select %p250, %s23, 1
        %s252 = smul.addr %s251, 8
        %s253 = scalar_lea.vmem %s5, %s252
        %p254 = scmp.lt.s32.totalorder %s23, 1
        %s255 = scalar_select %p254, %s23, 1
        %s256 = smul.addr %s255, 8
        %s257 = scalar_lea.vmem %s5, %s256
        %p258 = scmp.eq.s32.totalorder %s24, 0
        // Predicated region
        $region45: #{tpu_custom_call.1} parent=39 // pred_check
          %p259 = pneg %p258
        $region46: #{tpu_custom_call.1} parent=39 // pred_check_branch
          %261 = sbr.rel (%p259) target = $region48
        $region47: #{tpu_custom_call.1} parent=39 // pred_region
          %vm262 = vcmask 7168
          %263 = vst.msk [vmem:[#allocation2] sm:$0xff] %vm262, 0.0
          %264 = vst.msk [vmem:[#allocation3] sm:$0xff] %vm262, -inf
          %265 = vst.msk [vmem:[#allocation4] sm:$0xff] %vm262, 0.0
          %266 = vst.msk [vmem:[#allocation5] sm:$0xff] %vm262, 0.0
        $region48: #{tpu_custom_call.1} parent=39 // pred_fallthru
          _
        %v267 = vld [vmem:[%s227] sm:$0xff]
        %268 = vmax.xlane.f32.xlu0 %v267
        %v269 = vpop.xlane.xlu0 %268
        %v270 = vld [vmem:[#allocation3] sm:$0xff]
        %v271 = vmax.f32 %v270, %v269
        %v272 = vsub.f32 %v270, %v271
        %v273 = vmul.f32 %v272, 1.442695
        %v274 = vpow.pop %v273
        %276 = vset.pattern.permute.xlu0 0
        %277 = vperm.xlu0 %276, %v271
        %v278 = vpop.permute.xlu0 %277
        %v280 = vsub.f32 %v267, %v278
        %v281 = vmul.f32 %v280, 1.442695
        %v282 = vpow.pop %v281
        %v283 = vld [vmem:[#allocation2] sm:$0xff]
        %284 = vadd.xlane.f32.xlu0 %v267
        %v285 = vpop.xlane.xlu0 %284
        %v286 = vadd.f32 %v283, %v285
        %vm287 = vcmask 7168
        %288 = vst.msk [vmem:[#allocation2] sm:$0xff] %vm287, %v286
        %v289 = vld [vmem:[#allocation4] sm:$0xff]
        %v290 = vmul.f32 %v274, %v289
        %291 = vadd.xlane.f32.xlu0 %v282
        %v292 = vpop.xlane.xlu0 %291
        %v293 = vadd.f32 %v290, %v292
        %294 = vst.msk [vmem:[#allocation4] sm:$0xff] %vm287, %v293
        %v295 = vld [vmem:[#allocation5] sm:$0xff]
        %v296 = vmul.f32 %v274, %v295
        %v297 = vmul.f32 %v282, %v267
        %298 = vadd.xlane.f32.xlu0 %v297
        %v299 = vpop.xlane.xlu0 %298
        %v300 = vadd.f32 %v296, %v299
        %301 = vst.msk [vmem:[#allocation5] sm:$0xff] %vm287, %v300
        %302 = vst.msk [vmem:[#allocation3] sm:$0xff] %vm287, %v271
        %p303 = scmp.eq.s32.totalorder %s24, 1
        // Predicated region
        $region49: #{tpu_custom_call.1} parent=39 // pred_check
          %p304 = pneg %p303
        $region50: #{tpu_custom_call.1} parent=39 // pred_check_branch
          %306 = sbr.rel (%p304) target = $region52
        $region51: #{tpu_custom_call.1} parent=39 // pred_region
          %v307 = vld [vmem:[#allocation2] sm:$0xff]
          %v308 = vmul.f32 %v307, 0.00390625
          %v309 = vld [vmem:[#allocation3] sm:$0xff]
          %v310 = vld [vmem:[#allocation5] sm:$0xff]
          %v311 = vld [vmem:[#allocation4] sm:$0xff]
          %v312 = vrcp.pop %v311
          %v313 = vmul.f32 %v311, %v312
          %v314 = vsub.f32 1.0, %v313
          %v315 = vmul.f32 %v312, %v314
          %v316 = vadd.f32 %v312, %v315
          %vm317 = vweird.f32 %v311
          %vm318 = vweird.f32 %v312
          %vm319 = vmor %vm317, %vm318
          %v320 = vsel %vm319, %v312, %v316
          %v321 = vand.u32 2147483647, %v311
          %vm322 = vcmp.eq.f32.partialorder %v321, 8.507059e+37
          %v323 = vand.u32 %v311, 2147483648
          %v324 = vor.u32 1.1754944e-38, %v323
          %v325 = vsel %vm322, %v324, %v320
          %v326 = vmul.f32 %v310, %v325
          %v327 = vlaneseq
          %v328 = vand.u32 %v327, 127
          %vm329 = vcmp.eq.s32.totalorder %v328, 0
          %vm330 = vcmp.eq.s32.totalorder %v328, 1
          %332 = vset.pattern.permute.xlu0 0
          %333 = vperm.xlu0 %332, %v309
          %v334 = vpop.permute.xlu0 %333
          %337 = vset.pattern.permute.xlu0 0
          %338 = vperm.xlu0 %337, %v326
          %v339 = vpop.permute.xlu0 %338
          %v341 = vsel %vm330, %v334, %v339
          %343 = vset.pattern.permute.xlu0 0
          %344 = vperm.xlu0 %343, %v308
          %v345 = vpop.permute.xlu0 %344
          %v347 = vsel %vm329, %v345, %v341
          %v348 = vld [vmem:[%s1] sm:$0xf]
          %v349 = vld [vmem:[%s2] sm:$0xf]
          %351 = vset.pattern.permute.xlu0 0
          %352 = vperm.xlu0 %351, %v349
          %v353 = vpop.permute.xlu0 %352
          %vm355 = vcmask 64512
          %v357 = vsel %vm355, %v348, 0
          %359 = vmatpush.msra.mxu0 0.0
          %360 = vmatpush.msra.mxu0 0.0
          %361 = vmatpush.msra.mxu0 0.0
          %362 = vmatpush.msra.mxu0 0.0
          %363 = vmatpush.msra.mxu0 0.0
          %364 = vmatpush.msra.mxu0 0.0
          %365 = vmatpush.msra.mxu0 0.0
          %366 = vmatpush.msra.mxu0 0.0
          %367 = vmatpush.msra.mxu0 0.0
          %368 = vmatpush.msra.mxu0 0.0
          %369 = vmatpush.msra.mxu0 0.0
          %370 = vmatpush.msra.mxu0 0.0
          %371 = vmatpush.msra.mxu0 0.0
          %372 = vmatpush.msra.mxu0 0.0
          %373 = vmatpush.msra.mxu0 0.0
          %374 = vmatpush.msra.mxu0 %v347
          %375 = vmatmul.f32.gmra.mxu0 %v357
          %v376 = vpop.f32.mrf.mxu0
          %v377 = vadd.f32 %v353, %v376
          %378 = vdwg.mxu0
          %v379 = vmax.f32 %v377, 0.0
          %v380 = vsel %vm329, %v379, 0.0
          %vm381 = vcmask 19456
          %v382 = vsel %vm381, %v380, 0.0
          %383 = vadd.xlane.f32.xlu0 %v382
          %v384 = vpop.xlane.xlu0 %383
          %v385 = vsel %vm330, %v379, 0.0
          %v386 = vsel %vm381, %v385, 0.0
          %387 = vadd.xlane.f32.xlu0 %v386
          %v388 = vpop.xlane.xlu0 %387
          %vm389 = vcmp.eq.s32.totalorder %v328, 2
          %v390 = vsel %vm389, %v379, 0.0
          %v391 = vsel %vm381, %v390, 0.0
          %392 = vadd.xlane.f32.xlu0 %v391
          %v393 = vpop.xlane.xlu0 %392
          %v394 = vadd.f32 %v384, %v388
          %v395 = vmul.f32 %v393, %v394
          %v396 = vld [vmem:[%s3] sm:$0xff]
          %v397 = vld [vmem:[%s4] sm:$0xff]
          %vm398 = vcmask 31744
          %v400 = vsel %vm398, %v396, 0
          %vm402 = vcmask 1043456
          %v404 = vsel %vm402, %v395, 0
          %406 = vmatpush.msra.mxu0 0.0
          %407 = vmatpush.msra.mxu0 0.0
          %408 = vmatpush.msra.mxu0 0.0
          %409 = vmatpush.msra.mxu0 0.0
          %410 = vmatpush.msra.mxu0 0.0
          %411 = vmatpush.msra.mxu0 0.0
          %412 = vmatpush.msra.mxu0 0.0
          %413 = vmatpush.msra.mxu0 0.0
          %414 = vmatpush.msra.mxu0 0.0
          %415 = vmatpush.msra.mxu0 0.0
          %416 = vmatpush.msra.mxu0 0.0
          %417 = vmatpush.msra.mxu0 0.0
          %418 = vmatpush.msra.mxu0 0.0
          %419 = vmatpush.msra.mxu0 0.0
          %420 = vmatpush.msra.mxu0 0.0
          %421 = vmatpush.msra.mxu0 %v404
          %422 = vmatmul.f32.gmra.mxu0 %v400
          %v423 = vpop.f32.mrf.mxu0
          %v424 = vadd.f32 %v397, %v423
          %425 = vdwg.mxu0
          %v426 = vxor.u32 %v424, 2147483648
          %v427 = vmul.f32 %v426, 1.442695
          %v428 = vpow.pop %v427
          %v429 = vadd.f32 %v428, 1.0
          %v430 = vrcp.pop %v429
          %v431 = vmul.f32 %v429, %v430
          %v432 = vsub.f32 1.0, %v431
          %v433 = vmul.f32 %v430, %v432
          %v434 = vadd.f32 %v430, %v433
          %vm435 = vweird.f32 %v429
          %vm436 = vweird.f32 %v430
          %vm437 = vmor %vm435, %vm436
          %v438 = vsel %vm437, %v430, %v434
          %v439 = vand.u32 2147483647, %v429
          %vm440 = vcmp.eq.f32.partialorder %v439, 8.507059e+37
          %v441 = vand.u32 %v429, 2147483648
          %v442 = vor.u32 1.1754944e-38, %v441
          %v443 = vsel %vm440, %v442, %v438
          %v444 = vmul.f32 1.0, %v443
          %445 = vst.msk [vmem:[%s257] sm:$0xff] %vm287, %v444
        $region52: #{tpu_custom_call.1} parent=39 // pred_fallthru
          _
        %p446 = scmp.lt.s32.totalorder %s23, 1
        %s447 = scalar_select %p446, %s23, 1
        %s448 = smul.addr %s447, 8
        %s449 = scalar_lea.vmem %s5, %s448
        // Predicated region
        $region53: #{tpu_custom_call.1} parent=39 // pred_check
          %p450 = pneg %p161
        $region54: #{tpu_custom_call.1} parent=39 // pred_check_branch
          %452 = sbr.rel (%p450) target = $region56
        $region55: #{tpu_custom_call.1} parent=39 // pred_region
          _
        $region56: #{tpu_custom_call.1} parent=39 // pred_fallthru
          _
      $region40: #{tpu_custom_call.1} parent=5 // pred_fallthru
        _
      %p453 = scmp.le.s32.totalorder 2, %s14
      // Predicated region
      $region57: #{tpu_custom_call.1} parent=5 // pred_check
        %p454 = pneg %p453
      $region58: #{tpu_custom_call.1} parent=5 // pred_check_branch
        %456 = sbr.rel (%p454) target = $region60
      $region59: #{tpu_custom_call.1} parent=5 // pred_region
        %s457 = ssub.s32 %s14, 2
        // Predicated region
        $region61: #{tpu_custom_call.1} parent=59 // pred_check
          %p458 = pneg %p167
        $region62: #{tpu_custom_call.1} parent=59 // pred_check_branch
          %460 = sbr.rel (%p458) target = $region64
        $region63: #{tpu_custom_call.1} parent=59 // pred_region
          %p461 = scmp.lt.s32.totalorder %s25, 1
          %s462 = scalar_select %p461, %s25, 1
          %s463 = smul.addr %s462, 8
          %s464 = scalar_lea.vmem %s5, %s463
        $region64: #{tpu_custom_call.1} parent=59 // pred_fallthru
          _
      $region60: #{tpu_custom_call.1} parent=5 // pred_fallthru
        _
    $region6: #{tpu_custom_call.1} parent=1 // loop_footer
      %s18 = sadd.s32 1, %s14
    $region7: #{tpu_custom_call.1} parent=1 // loop_footer_branch
      %13 = sbr.rel target = $region3
    $region8: #{tpu_custom_call.1} parent=1 // loop_exit
      _
    %465 = vsyncpa [#allocation7], 1
    %s466 = scalar_lea.sflag [#allocation7], 1
    %467 = vsyncpa %s466, 1

</llo_original>
